<compile_context>
chip_gen: v7x
topology: tpu7x:2x2x1
jax: 0.10.0
libtpu: 0.0.40
codegen_flags: <defaults>
</compile_context>

<pallas_src>
import functools

import jax
import jax.numpy as jnp
from jax.experimental import pallas as pl
from jax.experimental.pallas import tpu as pltpu


def _toeplitz_conv_bn_relu_kernel(rows_ref, w_ref, scale_ref, bias_ref, o_ref):
    # rows_ref : (tR, K)        bf16, K = KH*Wp*Cin
    # w_ref    : (K, WCp)       bf16, block-Toeplitz conv weight (lane-padded)
    # scale_ref: (1, WCp)       f32, folded BN scale tiled over Wout
    # bias_ref : (1, WCp)       f32, folded BN bias  tiled over Wout
    # o_ref    : (tR, WCp)
    acc = jnp.dot(rows_ref[...], w_ref[...],
                  preferred_element_type=jnp.float32)       # single MXU matmul
    y = acc * scale_ref[...] + bias_ref[...]                 # fused BatchNorm (eval)
    o_ref[...] = jnp.maximum(y, 0.0).astype(o_ref.dtype)     # fused ReLU, lane-dense store


def _round_up(x, m):
    return ((x + m - 1) // m) * m


def _pick_row_tile(R, max_rows=512):
    """Largest row tile: full (padded-to-8) R if small, else a multiple-of-8
    divisor of the padded row count; falls back to max_rows (partial last tile
    handled by zero-padding in the wrapper)."""
    R8 = _round_up(R, 8)
    if R8 <= max_rows:
        return R8
    for t in range(max_rows - max_rows % 8, 7, -8):
        if R8 % t == 0:
            return t
    return max_rows


@functools.partial(jax.jit, static_argnames=("padding", "eps"))
def conv2d_bn_relu(x_nchw, weight_oihw, gamma, beta, running_mean, running_var,
                   padding=1, eps=1e-5):
    """Conv2d(bias=False, stride=1) + BatchNorm2d(eval, running stats) + ReLU."""
    N, Cin, H, W = x_nchw.shape
    Cout, _, KH, KW = weight_oihw.shape
    Hout = H + 2 * padding - (KH - 1)
    Wout = W + 2 * padding - (KW - 1)
    Wp = W + 2 * padding

    # ---------------- wrapper glue (layout + BN folding), plain JAX ----------
    # NCHW -> NHWC, one bf16 cast, zero-pad H and W.
    x = jnp.transpose(x_nchw, (0, 2, 3, 1)).astype(jnp.bfloat16)
    x = jnp.pad(x, ((0, 0), (padding, padding), (padding, padding), (0, 0)))

    # Overlapping KH-row windows:
    #   rows[n*Hout + h, (kh*Wp + wp)*Cin + ci] = x_pad[n, h+kh, wp, ci]
    h_idx = jnp.arange(Hout)[:, None] + jnp.arange(KH)[None, :]        # (Hout, KH)
    rows = x[:, h_idx]                                                 # (N, Hout, KH, Wp, Cin)
    rows = rows.reshape(N * Hout, KH * Wp * Cin)

    # Block-Toeplitz weight:
    #   w_toep[(kh*Wp + wp)*Cin + ci, w*Cout + co] =
    #       weight[kh, wp - w, ci, co] if 0 <= wp - w < KW else 0
    w_hwio = jnp.transpose(weight_oihw, (2, 3, 1, 0))                  # (KH, KW, Cin, Cout)
    kw_idx = jnp.arange(Wp)[:, None] - jnp.arange(Wout)[None, :]       # (Wp, Wout)
    valid = (kw_idx >= 0) & (kw_idx < KW)
    gathered = w_hwio[:, jnp.clip(kw_idx, 0, KW - 1)]                  # (KH, Wp, Wout, Cin, Cout)
    w_toep = jnp.where(valid[None, :, :, None, None], gathered, 0.0)
    w_toep = jnp.transpose(w_toep, (0, 1, 3, 2, 4))                    # (KH, Wp, Cin, Wout, Cout)
    w_toep = w_toep.reshape(KH * Wp * Cin, Wout * Cout).astype(jnp.bfloat16)

    # Fold BatchNorm (eval) into per-channel scale/bias, tiled to (Wout*Cout).
    scale = (gamma / jnp.sqrt(running_var + eps)).astype(jnp.float32)  # (Cout,)
    bias = (beta - running_mean * scale).astype(jnp.float32)           # (Cout,)
    scale_t = jnp.tile(scale, Wout).reshape(1, Wout * Cout)
    bias_t = jnp.tile(bias, Wout).reshape(1, Wout * Cout)

    R = N * Hout                 # matmul M (batch folded in)
    K = KH * Wp * Cin            # contraction dim
    WC = Wout * Cout             # output lane dim (128 at the test size)

    # ----- pad to TPU-friendly extents (lane-dense stores, (8,128) blocks) ---
    WCp = _round_up(WC, 128)
    tR = _pick_row_tile(R)
    Rp = _round_up(_round_up(R, 8), tR)

    if Rp != R:
        rows = jnp.pad(rows, ((0, Rp - R), (0, 0)))
    if WCp != WC:
        w_toep = jnp.pad(w_toep, ((0, 0), (0, WCp - WC)))
        scale_t = jnp.pad(scale_t, ((0, 0), (0, WCp - WC)))
        bias_t = jnp.pad(bias_t, ((0, 0), (0, WCp - WC)))

    cost = pl.CostEstimate(
        flops=int(2 * Rp * K * WCp),
        transcendentals=0,
        bytes_accessed=int(rows.size * 2 + w_toep.size * 2
                           + scale_t.size * 4 + bias_t.size * 4
                           + Rp * WCp * jnp.dtype(x_nchw.dtype).itemsize))

    out = pl.pallas_call(
        _toeplitz_conv_bn_relu_kernel,
        out_shape=jax.ShapeDtypeStruct((Rp, WCp), x_nchw.dtype),
        grid_spec=pltpu.PrefetchScalarGridSpec(
            num_scalar_prefetch=0,
            grid=(Rp // tR,),
            in_specs=[
                pl.BlockSpec((tR, K), lambda r: (r, 0)),
                pl.BlockSpec((K, WCp), lambda r: (0, 0)),
                pl.BlockSpec((1, WCp), lambda r: (0, 0)),
                pl.BlockSpec((1, WCp), lambda r: (0, 0)),
            ],
            out_specs=pl.BlockSpec((tR, WCp), lambda r: (r, 0)),
        ),
        compiler_params=pltpu.CompilerParams(
            dimension_semantics=("parallel",)),
        cost_estimate=cost,
    )(rows, w_toep, scale_t, bias_t)

    # (Rp, WCp) -> (N*Hout, Wout*Cout) -> NCHW
    out = out[:R, :WC].reshape(N, Hout, Wout, Cout)
    return jnp.transpose(out, (0, 3, 1, 2))


def _reference(x_nchw, weight_oihw, gamma, beta, running_mean, running_var,
               padding=1, eps=1e-5):
    y = jax.lax.conv_general_dilated(
        x_nchw, weight_oihw, window_strides=(1, 1),
        padding=[(padding, padding), (padding, padding)],
        dimension_numbers=("NCHW", "OIHW", "NCHW"))
    scale = gamma / jnp.sqrt(running_var + eps)
    bias = beta - running_mean * scale
    y = y * scale[None, :, None, None] + bias[None, :, None, None]
    return jnp.maximum(y, 0.0)


if __name__ == "__main__":
    # Conv2dReLU(in_channels=4, out_channels=8, kernel_size=3, padding=1,
    #            stride=1, use_batchnorm=True)  -> conv has no bias.
    N, Cin, H, W = 2, 4, 16, 16
    Cout, Kk, pad = 8, 3, 1

    key = jax.random.PRNGKey(0)
    k_x, k_w, k_g, k_b, k_m, k_v = jax.random.split(key, 6)

    x = jax.random.normal(k_x, (N, Cin, H, W), jnp.float32)
    weight = jax.random.normal(k_w, (Cout, Cin, Kk, Kk), jnp.float32) * 0.1
    gamma = 1.0 + 0.1 * jax.random.normal(k_g, (Cout,), jnp.float32)
    beta = 0.1 * jax.random.normal(k_b, (Cout,), jnp.float32)
    running_mean = 0.1 * jax.random.normal(k_m, (Cout,), jnp.float32)
    running_var = 1.0 + 0.1 * jax.random.uniform(k_v, (Cout,), jnp.float32)

    out = conv2d_bn_relu(x, weight, gamma, beta, running_mean, running_var,
                         padding=pad)
    out = jax.block_until_ready(out)

    ref = _reference(x, weight, gamma, beta, running_mean, running_var,
                     padding=pad)
    assert out.shape == (N, Cout, H, W)
    # bf16 matmul inputs (f32 accumulation) -> relaxed tolerance vs f32 reference.
    assert jnp.allclose(out, ref, rtol=3e-2, atol=3e-2), "mismatch vs reference"

    print("KERNEL_OK")
</pallas_src>

<mosaic_0001>
module attributes {stable_mosaic.version = 11 : i64} {
  func.func @_toeplitz_conv_bn_relu_kernel(%arg0: i32, %arg1: memref<32x216xbf16, #tpu.memory_space<vmem>>, %arg2: memref<216x128xbf16, #tpu.memory_space<vmem>>, %arg3: memref<1x128xf32, #tpu.memory_space<vmem>>, %arg4: memref<1x128xf32, #tpu.memory_space<vmem>>, %arg5: memref<32x128xf32, #tpu.memory_space<vmem>>) attributes {dimension_semantics = [#tpu.dimension_semantics<parallel>], iteration_bounds = array<i64: 1>, scalar_prefetch = 0 : i64, scratch_operands = 0 : i64, tpu.core_type = #tpu.core_type<tc>, window_params = [{transform_indices = @transform_0, window_bounds = array<i64: 32, 216>}, {pipeline_mode = #tpu.pipeline_mode<synchronous>, transform_indices = @transform_1, window_bounds = array<i64: 216, 128>}, {pipeline_mode = #tpu.pipeline_mode<synchronous>, transform_indices = @transform_2, window_bounds = array<i64: 1, 128>}, {pipeline_mode = #tpu.pipeline_mode<synchronous>, transform_indices = @transform_3, window_bounds = array<i64: 1, 128>}, {transform_indices = @transform_4, window_bounds = array<i64: 32, 128>}]} {
    %c0 = arith.constant 0 : index
    %c0_0 = arith.constant 0 : index
    %0 = vector.load %arg1[%c0, %c0_0] : memref<32x216xbf16, #tpu.memory_space<vmem>>, vector<32x216xbf16>
    %c0_1 = arith.constant 0 : index
    %c0_2 = arith.constant 0 : index
    %1 = vector.load %arg2[%c0_1, %c0_2] : memref<216x128xbf16, #tpu.memory_space<vmem>>, vector<216x128xbf16>
    %cst = arith.constant dense<0.000000e+00> : vector<32x128xf32>
    %2 = tpu.matmul %0, %1, %cst {dimension_numbers = #tpu.dot_dimension_numbers<[1], [0], [0], [1], [0, 0, 1, 1], [], []>} : vector<32x216xbf16>, vector<216x128xbf16>, vector<32x128xf32> -> vector<32x128xf32>
    %c0_3 = arith.constant 0 : index
    %c0_4 = arith.constant 0 : index
    %3 = vector.load %arg3[%c0_3, %c0_4] : memref<1x128xf32, #tpu.memory_space<vmem>>, vector<1x128xf32>
    %4 = vector.broadcast %3 : vector<1x128xf32> to vector<32x128xf32>
    %5 = arith.mulf %2, %4 : vector<32x128xf32>
    %c0_5 = arith.constant 0 : index
    %c0_6 = arith.constant 0 : index
    %6 = vector.load %arg4[%c0_5, %c0_6] : memref<1x128xf32, #tpu.memory_space<vmem>>, vector<1x128xf32>
    %7 = vector.broadcast %6 : vector<1x128xf32> to vector<32x128xf32>
    %8 = arith.addf %5, %7 : vector<32x128xf32>
    %cst_7 = arith.constant 0.000000e+00 : f32
    %9 = vector.broadcast %cst_7 : f32 to vector<32x128xf32>
    %10 = arith.maximumf %8, %9 : vector<32x128xf32>
    %c0_8 = arith.constant 0 : index
    %c0_9 = arith.constant 0 : index
    %11 = vector.load %arg5[%c0_8, %c0_9] : memref<32x128xf32, #tpu.memory_space<vmem>>, vector<32x128xf32>
    tpu.vector_store %arg5[%c0_8, %c0_9], %10 {strides = array<i32>} : memref<32x128xf32, #tpu.memory_space<vmem>>, vector<32x128xf32>,
    return
  }
  func.func @transform_0(%arg0: i32) -> (i32, i32) {
    %c0_i32 = arith.constant 0 : i32
    %c0_i32_0 = arith.constant 0 : i32
    return %arg0, %c0_i32 : i32, i32
  }
  func.func @transform_1(%arg0: i32) -> (i32, i32) {
    %c0_i32 = arith.constant 0 : i32
    %c0_i32_0 = arith.constant 0 : i32
    %c0_i32_1 = arith.constant 0 : i32
    return %c0_i32, %c0_i32_0 : i32, i32
  }
  func.func @transform_2(%arg0: i32) -> (i32, i32) {
    %c0_i32 = arith.constant 0 : i32
    %c0_i32_0 = arith.constant 0 : i32
    %c0_i32_1 = arith.constant 0 : i32
    return %c0_i32, %c0_i32_0 : i32, i32
  }
  func.func @transform_3(%arg0: i32) -> (i32, i32) {
    %c0_i32 = arith.constant 0 : i32
    %c0_i32_0 = arith.constant 0 : i32
    %c0_i32_1 = arith.constant 0 : i32
    return %c0_i32, %c0_i32_0 : i32, i32
  }
  func.func @transform_4(%arg0: i32) -> (i32, i32) {
    %c0_i32 = arith.constant 0 : i32
    %c0_i32_0 = arith.constant 0 : i32
    return %arg0, %c0_i32 : i32, i32
  }
}

</mosaic_0001>

<llo_original>
// kernel: tile.13
$region0: #{tile.13}
  #allocation0 [shape = 's32[1]{0}', space=sflag, size = 0x4, scoped, tag = 'scoped memory for tile.13']
  %s0 = inlined_call_operand.vmem [shape: f32[8], index: 0, kind: input, shape index: {}]
  %s1 = inlined_call_operand.vmem [shape: f32[16,8], index: 1, kind: output, shape index: {}]
  // Predicated region
  $region2: #{tile.13} parent=0 // pred_check
    _
  $region3: #{tile.13} parent=0 // pred_check_branch
    %3 = sbr.rel (0) target = $region5
  $region4: #{tile.13} parent=0 // pred_region
    _
  $region5: #{tile.13} parent=0 // pred_fallthru
    _
  %v4 = vld [vmem:[%s0] ss:$0 sm:$0xff]
  %5 = vst [vmem:[%s1] sm:$0xff] %v4
  %s6 = scalar_lea.vmem %s1, 8
  %7 = vst [vmem:[%s6] sm:$0xff] %v4

// kernel: tile.14
$region0: #{tile.14}
  %s0 = inlined_call_operand.vmem [shape: f32[16,8], index: 0, kind: input, shape index: {}]
  %s1 = inlined_call_operand.vmem [shape: f32[1,128], index: 1, kind: output, shape index: {}]
  $region1: #{tile.14} parent=0
    #allocation0 [shape = 'u8[4096]{0}', space=vmem, size = 0x1000, scoped, tag = 'scoped mem for output reshape']
    %v2 = vld [vmem:[%s0] sm:$0x1]
    %vm3 = vcmask 64512
    %4 = vst.msk [vmem:[#allocation0] sm:$0x1] %vm3, %v2
    %s5 = scalar_lea.vmem %s0, 15
    %v6 = vld [vmem:[%s5] sm:$0x1]
    %7 = vrot.lane.b32.xlu0 %v6, 120
    %v8 = vpop.permute.xlu0 %7
    %vm9 = vcmask 1048512
    %10 = vst.msk [vmem:[#allocation0] sm:$0x1] %vm9, %v8
    %s11 = scalar_lea.vmem %s0, 14
    %v12 = vld [vmem:[%s11] sm:$0x1]
    %13 = vrot.lane.b32.xlu0 %v12, 112
    %v14 = vpop.permute.xlu0 %13
    %vm15 = vcmask 982912
    %16 = vst.msk [vmem:[#allocation0] sm:$0x1] %vm15, %v14
    %s17 = scalar_lea.vmem %s0, 13
    %v18 = vld [vmem:[%s17] sm:$0x1]
    %19 = vrot.lane.b32.xlu0 %v18, 104
    %v20 = vpop.permute.xlu0 %19
    %vm21 = vcmask 917312
    %22 = vst.msk [vmem:[#allocation0] sm:$0x1] %vm21, %v20
    %s23 = scalar_lea.vmem %s0, 12
    %v24 = vld [vmem:[%s23] sm:$0x1]
    %25 = vrot.lane.b32.xlu0 %v24, 96
    %v26 = vpop.permute.xlu0 %25
    %vm27 = vcmask 851712
    %28 = vst.msk [vmem:[#allocation0] sm:$0x1] %vm27, %v26
    %s29 = scalar_lea.vmem %s0, 11
    %v30 = vld [vmem:[%s29] sm:$0x1]
    %31 = vrot.lane.b32.xlu0 %v30, 88
    %v32 = vpop.permute.xlu0 %31
    %vm33 = vcmask 786112
    %34 = vst.msk [vmem:[#allocation0] sm:$0x1] %vm33, %v32
    %s35 = scalar_lea.vmem %s0, 10
    %v36 = vld [vmem:[%s35] sm:$0x1]
    %37 = vrot.lane.b32.xlu0 %v36, 80
    %v38 = vpop.permute.xlu0 %37
    %vm39 = vcmask 720512
    %40 = vst.msk [vmem:[#allocation0] sm:$0x1] %vm39, %v38
    %s41 = scalar_lea.vmem %s0, 9
    %v42 = vld [vmem:[%s41] sm:$0x1]
    %43 = vrot.lane.b32.xlu0 %v42, 72
    %v44 = vpop.permute.xlu0 %43
    %vm45 = vcmask 654912
    %46 = vst.msk [vmem:[#allocation0] sm:$0x1] %vm45, %v44
    %s47 = scalar_lea.vmem %s0, 8
    %v48 = vld [vmem:[%s47] sm:$0x1]
    %49 = vrot.lane.b32.xlu0 %v48, 64
    %v50 = vpop.permute.xlu0 %49
    %vm51 = vcmask 589312
    %52 = vst.msk [vmem:[#allocation0] sm:$0x1] %vm51, %v50
    %s53 = scalar_lea.vmem %s0, 7
    %v54 = vld [vmem:[%s53] sm:$0x1]
    %55 = vrot.lane.b32.xlu0 %v54, 56
    %v56 = vpop.permute.xlu0 %55
    %vm57 = vcmask 523712
    %58 = vst.msk [vmem:[#allocation0] sm:$0x1] %vm57, %v56
    %s59 = scalar_lea.vmem %s0, 6
    %v60 = vld [vmem:[%s59] sm:$0x1]
    %61 = vrot.lane.b32.xlu0 %v60, 48
    %v62 = vpop.permute.xlu0 %61
    %vm63 = vcmask 458112
    %64 = vst.msk [vmem:[#allocation0] sm:$0x1] %vm63, %v62
    %s65 = scalar_lea.vmem %s0, 5
    %v66 = vld [vmem:[%s65] sm:$0x1]
    %67 = vrot.lane.b32.xlu0 %v66, 40
    %v68 = vpop.permute.xlu0 %67
    %vm69 = vcmask 392512
    %70 = vst.msk [vmem:[#allocation0] sm:$0x1] %vm69, %v68
    %s71 = scalar_lea.vmem %s0, 4
    %v72 = vld [vmem:[%s71] sm:$0x1]
    %73 = vrot.lane.b32.xlu0 %v72, 32
    %v74 = vpop.permute.xlu0 %73
    %vm75 = vcmask 326912
    %76 = vst.msk [vmem:[#allocation0] sm:$0x1] %vm75, %v74
    %s77 = scalar_lea.vmem %s0, 3
    %v78 = vld [vmem:[%s77] sm:$0x1]
    %79 = vrot.lane.b32.xlu0 %v78, 24
    %v80 = vpop.permute.xlu0 %79
    %vm81 = vcmask 261312
    %82 = vst.msk [vmem:[#allocation0] sm:$0x1] %vm81, %v80
    %s83 = scalar_lea.vmem %s0, 2
    %v84 = vld [vmem:[%s83] sm:$0x1]
    %85 = vrot.lane.b32.xlu0 %v84, 16
    %v86 = vpop.permute.xlu0 %85
    %vm87 = vcmask 195712
    %88 = vst.msk [vmem:[#allocation0] sm:$0x1] %vm87, %v86
    %s89 = scalar_lea.vmem %s0, 1
    %v90 = vld [vmem:[%s89] sm:$0x1]
    %91 = vrot.lane.b32.xlu0 %v90, 8
    %v92 = vpop.permute.xlu0 %91
    %vm93 = vcmask 130112
    %94 = vst.msk [vmem:[#allocation0] sm:$0x1] %vm93, %v92
    %s96 = sshllo.u32 0, 1
    %v98 = vld [vmem:[#allocation0] sm:%s96]
    %s99 = sshllo.u32 0, 1
    %100 = vst [vmem:[%s1] sm:%s99] %v98

// kernel: conv2d_bn_relu.1
$region0: #{conv2d_bn_relu.1}
  #allocation0 [shape = 'u32[]', space=smem, size = 0x4, offset = 0x4, fixed_abs, tag = 'smem constant byte address 0x4 - core index']
  #allocation1 [shape = 'u32[144,128]{1,0:T(1,128)}', space=vmem, size = 0x12000, scoped, tag = 'internal scratch']
  %s0 = inlined_call_operand.vmem [shape: bf16[32,216], index: 0, kind: input, shape index: {}]
  %s1 = inlined_call_operand.vmem [shape: bf16[216,128], index: 1, kind: input, shape index: {}]
  %s2 = inlined_call_operand.vmem [shape: f32[1,128], index: 2, kind: input, shape index: {}]
  %s3 = inlined_call_operand.vmem [shape: f32[1,128], index: 3, kind: input, shape index: {}]
  %s4 = inlined_call_operand.vmem [shape: f32[32,128], index: 4, kind: output, shape index: {}]
  %s5 = sld [smem:[#allocation0]]
  $region26: #{conv2d_bn_relu.1} parent=0
    _
  %s7 = ssub.s32 1, %s5
  %s8 = scalar_select 0, %s7, %s5
  // Predicated region
  $region2: #{conv2d_bn_relu.1} parent=0 // pred_check
    _
  $region3: #{conv2d_bn_relu.1} parent=0 // pred_check_branch
    %10 = sbr.rel (0) target = $region5
  $region4: #{conv2d_bn_relu.1} parent=0 // pred_region
    _
  $region5: #{conv2d_bn_relu.1} parent=0 // pred_fallthru
    _
  // Predicated region
  $region6: #{conv2d_bn_relu.1} parent=0 // pred_check
    _
  $region7: #{conv2d_bn_relu.1} parent=0 // pred_check_branch
    %12 = sbr.rel (0) target = $region9
  $region8: #{conv2d_bn_relu.1} parent=0 // pred_region
    _
  $region9: #{conv2d_bn_relu.1} parent=0 // pred_fallthru
    _
  // Predicated region
  $region10: #{conv2d_bn_relu.1} parent=0 // pred_check
    _
  $region11: #{conv2d_bn_relu.1} parent=0 // pred_check_branch
    %14 = sbr.rel (0) target = $region13
  $region12: #{conv2d_bn_relu.1} parent=0 // pred_region
    _
  $region13: #{conv2d_bn_relu.1} parent=0 // pred_fallthru
    _
  // Predicated region
  $region14: #{conv2d_bn_relu.1} parent=0 // pred_check
    _
  $region15: #{conv2d_bn_relu.1} parent=0 // pred_check_branch
    %16 = sbr.rel (0) target = $region17
  $region16: #{conv2d_bn_relu.1} parent=0 // pred_region
    _
  $region17: #{conv2d_bn_relu.1} parent=0 // pred_fallthru
    _
  %v18 = vld [vmem:[%s0] sm:$0xff]
  %v19 = vld [vmem:[%s0 + $0x8] sm:$0xff]
  %v20 = vld [vmem:[%s0 + $0x10] sm:$0xff]
  %v21 = vld [vmem:[%s0 + $0x18] sm:$0xff]
  %v22 = vld [vmem:[%s1] sm:$0xf]
  %v23 = vld [vmem:[%s1 + $0x4] sm:$0xf]
  %v24 = vld [vmem:[%s1 + $0x8] sm:$0xf]
  %v25 = vld [vmem:[%s1 + $0xc] sm:$0xf]
  %v26 = vld [vmem:[%s1 + $0x10] sm:$0xf]
  %v27 = vld [vmem:[%s1 + $0x14] sm:$0xf]
  %v28 = vld [vmem:[%s1 + $0x18] sm:$0xf]
  %v29 = vld [vmem:[%s1 + $0x1c] sm:$0xf]
  %v30 = vld [vmem:[%s1 + $0x20] sm:$0xf]
  %v31 = vld [vmem:[%s1 + $0x24] sm:$0xf]
  %v32 = vld [vmem:[%s1 + $0x28] sm:$0xf]
  %v33 = vld [vmem:[%s1 + $0x2c] sm:$0xf]
  %v34 = vld [vmem:[%s1 + $0x30] sm:$0xf]
  %v35 = vld [vmem:[%s1 + $0x34] sm:$0xf]
  %v36 = vld [vmem:[%s1 + $0x38] sm:$0xf]
  %v37 = vld [vmem:[%s1 + $0x3c] sm:$0xf]
  %v38 = vld [vmem:[%s1 + $0x40] sm:$0xf]
  %v39 = vld [vmem:[%s1 + $0x44] sm:$0xf]
  %v40 = vld [vmem:[%s1 + $0x48] sm:$0xf]
  %v41 = vld [vmem:[%s1 + $0x4c] sm:$0xf]
  %v42 = vld [vmem:[%s1 + $0x50] sm:$0xf]
  %v43 = vld [vmem:[%s1 + $0x54] sm:$0xf]
  %v44 = vld [vmem:[%s1 + $0x58] sm:$0xf]
  %v45 = vld [vmem:[%s1 + $0x5c] sm:$0xf]
  %v46 = vld [vmem:[%s1 + $0x60] sm:$0xf]
  %v47 = vld [vmem:[%s1 + $0x64] sm:$0xf]
  %v48 = vld [vmem:[%s1 + $0x68] sm:$0xf]
  %v53 = vunpack.c.l.b16 %v18
  %v54 = vunpack.c.h.b16 %v18
  %v55 = vunpack.c.l.b16 %v19
  %v56 = vunpack.c.h.b16 %v19
  %v57 = vunpack.c.l.b16 %v20
  %v58 = vunpack.c.h.b16 %v20
  %v59 = vunpack.c.l.b16 %v21
  %v60 = vunpack.c.h.b16 %v21
  %v61 = vpack.c.b16 %v55, %v53
  %v62 = vpack.c.b16 %v56, %v54
  %v63 = vpack.c.b16 %v59, %v57
  %v64 = vpack.c.b16 %v60, %v58
  %v94 = vunpack.c.l.b16 %v22
  %v95 = vunpack.c.l.b16 %v23
  %v96 = vunpack.c.l.b16 %v24
  %v97 = vunpack.c.l.b16 %v25
  %v98 = vunpack.c.l.b16 %v26
  %v99 = vunpack.c.l.b16 %v27
  %v100 = vunpack.c.l.b16 %v28
  %v101 = vunpack.c.l.b16 %v29
  %v102 = vunpack.c.l.b16 %v30
  %v103 = vunpack.c.l.b16 %v31
  %v104 = vunpack.c.l.b16 %v32
  %v105 = vunpack.c.l.b16 %v33
  %v106 = vunpack.c.l.b16 %v34
  %v107 = vunpack.c.l.b16 %v35
  %v108 = vunpack.c.l.b16 %v36
  %v109 = vunpack.c.l.b16 %v37
  %v110 = vunpack.c.l.b16 %v38
  %v111 = vunpack.c.l.b16 %v39
  %v112 = vunpack.c.l.b16 %v40
  %v113 = vunpack.c.l.b16 %v41
  %v114 = vunpack.c.l.b16 %v42
  %v115 = vunpack.c.l.b16 %v43
  %v116 = vunpack.c.l.b16 %v44
  %v117 = vunpack.c.l.b16 %v45
  %v118 = vunpack.c.l.b16 %v46
  %v119 = vunpack.c.l.b16 %v47
  %v120 = vunpack.c.l.b16 %v48
  %v121 = vpack.c.b16 %v95, %v94
  %v122 = vpack.c.b16 %v97, %v96
  %v123 = vpack.c.b16 %v99, %v98
  %v124 = vpack.c.b16 %v101, %v100
  %v125 = vpack.c.b16 %v103, %v102
  %v126 = vpack.c.b16 %v105, %v104
  %v127 = vpack.c.b16 %v107, %v106
  %v128 = vpack.c.b16 %v109, %v108
  %v129 = vpack.c.b16 %v111, %v110
  %v130 = vpack.c.b16 %v113, %v112
  %v131 = vpack.c.b16 %v115, %v114
  %v132 = vpack.c.b16 %v117, %v116
  %v133 = vpack.c.b16 %v119, %v118
  %v134 = vpack.c.b16 %v120, %v120
  %vm148 = vcmask 719872
  %v150 = vsel %vm148, %v62, 0
  %v153 = vsel %vm148, %v64, 0
  %vm155 = vcmask 1043456
  %v157 = vsel %vm155, %v134, 0
  %159 = vmatprep.subr.bf16.mxu0 0
  %160 = vmatpush1.bf16.msra.mxu0 %v121
  %161 = vmatprep.subr.bf16.mxu0 0
  %162 = vmatpush1.bf16.msra.mxu0 %v122
  %163 = vmatprep.subr.bf16.mxu0 0
  %164 = vmatpush1.bf16.msra.mxu0 %v123
  %165 = vmatprep.subr.bf16.mxu0 0
  %166 = vmatpush1.bf16.msra.mxu0 %v124
  %167 = vmatprep.subr.bf16.mxu0 0
  %168 = vmatpush1.bf16.msra.mxu0 %v125
  %169 = vmatprep.subr.bf16.mxu0 0
  %170 = vmatpush1.bf16.msra.mxu0 %v126
  %171 = vmatprep.subr.bf16.mxu0 0
  %172 = vmatpush1.bf16.msra.mxu0 %v127
  %173 = vmatprep.subr.bf16.mxu0 0
  %174 = vmatpush1.bf16.msra.mxu0 %v128
  %175 = vmatprep.subr.bf16.mxu0 0
  %176 = vmatpush1.bf16.msra.mxu0 %v129
  %177 = vmatprep.subr.bf16.mxu0 0
  %178 = vmatpush1.bf16.msra.mxu0 %v130
  %179 = vmatprep.subr.bf16.mxu0 0
  %180 = vmatpush1.bf16.msra.mxu0 %v131
  %181 = vmatprep.subr.bf16.mxu0 0
  %182 = vmatpush1.bf16.msra.mxu0 %v132
  %183 = vmatprep.subr.bf16.mxu0 0
  %184 = vmatpush1.bf16.msra.mxu0 %v133
  %185 = vmatprep.subr.bf16.mxu0 0
  %186 = vmatpush1.bf16.msra.mxu0 %v157
  %187 = vmatprep.subr.bf16.mxu0 0
  %188 = vmatpush1.bf16.msra.mxu0 0
  %189 = vmatprep.subr.bf16.mxu0 0
  %190 = vmatpush1.bf16.msra.mxu0 0
  %191 = vmatprep.mubr.bf16.mxu0 %v150
  %192 = vmatmul.mubr.bf16.gmra.mrb[0].mxu0 %v61
  %v193 = vpop.f32.mrb[0].mxu0
  %v194 = vadd.f32 0.0, %v193
  %v195 = vpop.f32.mrb[0].mxu0
  %v196 = vpop.f32.mrb[0].mxu0
  %v197 = vadd.f32 0.0, %v196
  %v198 = vpop.f32.mrb[0].mxu0
  %199 = vmatprep.mubr.bf16.mxu0 %v153
  %200 = vmatmul.mubr.bf16.gmra.mrb[0].mxu0 %v63
  %v201 = vpop.f32.mrb[0].mxu0
  %v202 = vadd.f32 0.0, %v201
  %v203 = vpop.f32.mrb[0].mxu0
  %v204 = vpop.f32.mrb[0].mxu0
  %v205 = vadd.f32 0.0, %v204
  %v206 = vpop.f32.mrb[0].mxu0
  %207 = vdwg.mxu0
  %v208 = vld [vmem:[%s2] sm:$0x1]
  %v210 = vlaneseq
  %v211 = vshrl.u32 %v210, 7
  %v212 = vsub.s32 0, %v211
  %v213 = vrot.slane %v208, %v212
  %v215 = vmul.f32 %v194, %v213
  %v216 = vmul.f32 %v197, %v213
  %v217 = vmul.f32 %v202, %v213
  %v218 = vmul.f32 %v205, %v213
  %v219 = vld [vmem:[%s3] sm:$0x1]
  %v221 = vlaneseq
  %v222 = vshrl.u32 %v221, 7
  %v223 = vsub.s32 0, %v222
  %v224 = vrot.slane %v219, %v223
  %v226 = vadd.f32 %v215, %v224
  %v227 = vadd.f32 %v216, %v224
  %v228 = vadd.f32 %v217, %v224
  %v229 = vadd.f32 %v218, %v224
  %v230 = vmax.f32 %v226, 0.0
  %v231 = vmax.f32 %v227, 0.0
  %v232 = vmax.f32 %v228, 0.0
  %v233 = vmax.f32 %v229, 0.0
  %234 = vst [vmem:[%s4] sm:$0xff] %v230
  %235 = vst [vmem:[%s4 + $0x8] sm:$0xff] %v231
  %236 = vst [vmem:[%s4 + $0x10] sm:$0xff] %v232
  %237 = vst [vmem:[%s4 + $0x18] sm:$0xff] %v233
  // Predicated region
  $region18: #{conv2d_bn_relu.1} parent=0 // pred_check
    _
  $region19: #{conv2d_bn_relu.1} parent=0 // pred_check_branch
    %239 = sbr.rel (0) target = $region21
  $region20: #{conv2d_bn_relu.1} parent=0 // pred_region
    _
  $region21: #{conv2d_bn_relu.1} parent=0 // pred_fallthru
    _
  // Predicated region
  $region22: #{conv2d_bn_relu.1} parent=0 // pred_check
    _
  $region23: #{conv2d_bn_relu.1} parent=0 // pred_check_branch
    %241 = sbr.rel (0) target = $region25
  $region24: #{conv2d_bn_relu.1} parent=0 // pred_region
    _
  $region25: #{conv2d_bn_relu.1} parent=0 // pred_fallthru
    _

</llo_original>
